<compile_context>
chip_gen: v7x
topology: tpu7x:2x2x1
jax: 0.10.0
libtpu: 0.0.40
codegen_flags: <defaults>
</compile_context>

<pallas_src>
import functools

import jax
import jax.numpy as jnp
from jax.experimental import pallas as pl
from jax.experimental.pallas import tpu as pltpu


_VMEM_LIMIT_BYTES = 32 * 1024 * 1024      # <= half of v7x's 64 MiB physical VMEM
_BLOCK_BUDGET_BYTES = 8 * 1024 * 1024     # per-call double-buffered block budget


def _round_up(x, m):
    return ((x + m - 1) // m) * m


def _pick_tile(preferred, bytes_per_column):
    """Largest tile (multiple of 128, <= preferred) whose double-buffered
    f32 blocks stay under the VMEM block budget."""
    t = preferred
    while t > 128 and 2 * bytes_per_column * t > _BLOCK_BUDGET_BYTES:
        t //= 2
    return max(t, 128)


# ---------------------------------------------------------------------------
# Kernel 1: edge inner product + reduction + sigmoid (feature-major, lane-dense)
# ---------------------------------------------------------------------------
def _edge_inner_kernel(zs_ref, zd_ref, out_ref, *, apply_sigmoid):
    # zs_ref, zd_ref: [C, TILE_E]; out_ref: [1, TILE_E]
    prod = zs_ref[...] * zd_ref[...]                 # full-lane VPU multiply
    val = jnp.sum(prod, axis=0, keepdims=True)       # cheap sublane reduce over C
    if apply_sigmoid:
        val = jax.nn.sigmoid(val)
    out_ref[...] = val.astype(out_ref.dtype)


# ---------------------------------------------------------------------------
# Kernel 2: collapsed affine map  attr.T = W_eff.T @ z.T + b_eff.T
# ---------------------------------------------------------------------------
def _node_mlp_kernel(zT_ref, wT_ref, bT_ref, out_ref):
    # zT_ref: [C, TILE_N]; wT_ref: [out_ch, C]; bT_ref: [out_ch, 1]
    h = jnp.dot(wT_ref[...], zT_ref[...], preferred_element_type=jnp.float32)
    out_ref[...] = (h + bT_ref[...]).astype(out_ref.dtype)


# ---------------------------------------------------------------------------
# Wrapper
# ---------------------------------------------------------------------------
def inner_product_decoder(z, edge_index, params, sigmoid=True):
    """params: list of 4 (W[in,out], b[1,out]) tuples:
       [lin_start, lin_list[0], lin_list[1], lin_end]."""
    N, C = z.shape
    E = edge_index.shape[1]
    out_ch = params[-1][0].shape[1]

    zT = z.T                                          # [C, N] feature-major

    # ------------------------- edge path ---------------------------------
    tile_e = _pick_tile(2048, 2 * C * 4)              # 2 inputs x C rows x f32
    e_pad = _round_up(max(E, 1), tile_e)
    src = jnp.pad(edge_index[0], (0, e_pad - E))
    dst = jnp.pad(edge_index[1], (0, e_pad - E))
    # TODO(synk): fuse this endpoint gather into the kernel (DMA / dynamic
    # gather) to avoid the z_src/z_dst HBM round trip on the mem-bound hot path.
    zsT = jnp.take(zT, src, axis=1)                   # [C, E_pad]
    zdT = jnp.take(zT, dst, axis=1)                   # [C, E_pad]

    value_padded = pl.pallas_call(
        functools.partial(_edge_inner_kernel, apply_sigmoid=sigmoid),
        out_shape=jax.ShapeDtypeStruct((1, e_pad), jnp.float32),
        grid=(e_pad // tile_e,),
        in_specs=[
            pl.BlockSpec((C, tile_e), lambda i: (0, i)),
            pl.BlockSpec((C, tile_e), lambda i: (0, i)),
        ],
        out_specs=pl.BlockSpec((1, tile_e), lambda i: (0, i)),
        compiler_params=pltpu.CompilerParams(
            dimension_semantics=("parallel",),
            vmem_limit_bytes=_VMEM_LIMIT_BYTES),
    )(zsT, zdT)
    value = value_padded[0, :E]                       # [E]

    # ---------------------- node-attribute path --------------------------
    # No activation between the linears -> fold into one affine map (exact).
    w_eff, b_eff = params[0]
    for w, b in params[1:]:
        w_eff = jnp.dot(w_eff, w, precision=jax.lax.Precision.HIGHEST)
        b_eff = jnp.dot(b_eff, w, precision=jax.lax.Precision.HIGHEST) + b
    w_effT = w_eff.T                                  # [out_ch, C]
    b_effT = b_eff.T                                  # [out_ch, 1]

    tile_n = _pick_tile(2048, (C + out_ch) * 4)
    n_pad = _round_up(N, tile_n)
    zT_pad = jnp.pad(zT, ((0, 0), (0, n_pad - N)))    # [C, N_pad]

    attr_T = pl.pallas_call(
        _node_mlp_kernel,
        out_shape=jax.ShapeDtypeStruct((out_ch, n_pad), z.dtype),
        grid=(n_pad // tile_n,),
        in_specs=[
            pl.BlockSpec((C, tile_n), lambda i: (0, i)),
            pl.BlockSpec((out_ch, C), lambda i: (0, 0)),
            pl.BlockSpec((out_ch, 1), lambda i: (0, 0)),
        ],
        out_specs=pl.BlockSpec((out_ch, tile_n), lambda i: (0, i)),
        compiler_params=pltpu.CompilerParams(
            dimension_semantics=("parallel",),
            vmem_limit_bytes=_VMEM_LIMIT_BYTES),
    )(zT_pad, w_effT, b_effT)

    attr = attr_T[:, :N].T                            # [N, out_ch]
    return value, attr


def init_params(key, in_channels, hidden_channels, output_channels, num_layers=2):
    """Deterministic PyTorch-Linear-style init: U(-1/sqrt(fan_in), 1/sqrt(fan_in))."""
    dims = ([(in_channels, hidden_channels)]
            + [(hidden_channels, hidden_channels)] * num_layers
            + [(hidden_channels, output_channels)])
    params = []
    for (fan_in, fan_out) in dims:
        key, kw, kb = jax.random.split(key, 3)
        bound = 1.0 / (fan_in ** 0.5)
        w = jax.random.uniform(kw, (fan_in, fan_out), jnp.float32, -bound, bound)
        b = jax.random.uniform(kb, (1, fan_out), jnp.float32, -bound, bound)
        params.append((w, b))
    return params


if __name__ == "__main__":
    in_channels, hidden_channels, output_channels = 8, 16, 4
    num_nodes, num_edges = 16, 8

    key = jax.random.PRNGKey(0)
    k_z, k_e, k_p = jax.random.split(key, 3)

    z = jax.random.normal(k_z, (num_nodes, in_channels), jnp.float32)
    edge_index = jax.random.randint(k_e, (2, num_edges), 0, num_nodes, jnp.int32)
    params = init_params(k_p, in_channels, hidden_channels, output_channels,
                         num_layers=2)

    value, attr = inner_product_decoder(z, edge_index, params, sigmoid=True)
    jax.block_until_ready((value, attr))

    # Lightweight correctness check vs. pure-JAX reference.
    ref_value = jax.nn.sigmoid(
        jnp.sum(z[edge_index[0]] * z[edge_index[1]], axis=1))
    h = z
    for w, b in params:
        h = h @ w + b
    assert value.shape == (num_edges,)
    assert attr.shape == (num_nodes, output_channels)
    assert jnp.allclose(value, ref_value, atol=1e-5, rtol=1e-5)
    assert jnp.allclose(attr, h, atol=1e-4, rtol=1e-4)

    print("KERNEL_OK")
</pallas_src>

<mosaic_0001>
module attributes {stable_mosaic.version = 11 : i64} {
  func.func @_edge_inner_kernel(%arg0: i32, %arg1: memref<8x2048xf32, #tpu.memory_space<vmem>>, %arg2: memref<8x2048xf32, #tpu.memory_space<vmem>>, %arg3: memref<1x2048xf32, #tpu.memory_space<vmem>>) attributes {dimension_semantics = [#tpu.dimension_semantics<parallel>], iteration_bounds = array<i64: 1>, scalar_prefetch = 0 : i64, scratch_operands = 0 : i64, tpu.core_type = #tpu.core_type<tc>, window_params = [{transform_indices = @transform_0, window_bounds = array<i64: 8, 2048>}, {transform_indices = @transform_1, window_bounds = array<i64: 8, 2048>}, {transform_indices = @transform_2, window_bounds = array<i64: 1, 2048>}]} {
    %c0 = arith.constant 0 : index
    %c0_0 = arith.constant 0 : index
    %0 = vector.load %arg1[%c0, %c0_0] : memref<8x2048xf32, #tpu.memory_space<vmem>>, vector<8x2048xf32>
    %c0_1 = arith.constant 0 : index
    %c0_2 = arith.constant 0 : index
    %1 = vector.load %arg2[%c0_1, %c0_2] : memref<8x2048xf32, #tpu.memory_space<vmem>>, vector<8x2048xf32>
    %2 = arith.mulf %0, %1 : vector<8x2048xf32>
    %cst = arith.constant dense<0.000000e+00> : vector<2048xf32>
    %3 = vector.multi_reduction <add>, %2, %cst [0] : vector<8x2048xf32> to vector<2048xf32>
    %4 = vector.shape_cast %3 : vector<2048xf32> to vector<1x2048xf32>
    %5 = arith.negf %4 : vector<1x2048xf32>
    %6 = math.exp %5 : vector<1x2048xf32>
    %cst_3 = arith.constant 1.000000e+00 : f32
    %7 = vector.broadcast %cst_3 : f32 to vector<1x2048xf32>
    %8 = arith.addf %7, %6 : vector<1x2048xf32>
    %9 = arith.divf %7, %8 : vector<1x2048xf32>
    %c0_4 = arith.constant 0 : index
    %c0_5 = arith.constant 0 : index
    %10 = vector.load %arg3[%c0_4, %c0_5] : memref<1x2048xf32, #tpu.memory_space<vmem>>, vector<1x2048xf32>
    tpu.vector_store %arg3[%c0_4, %c0_5], %9 {strides = array<i32>} : memref<1x2048xf32, #tpu.memory_space<vmem>>, vector<1x2048xf32>,
    return
  }
  func.func @transform_0(%arg0: i32) -> (i32, i32) {
    %c0_i32 = arith.constant 0 : i32
    %c0_i32_0 = arith.constant 0 : i32
    return %c0_i32, %arg0 : i32, i32
  }
  func.func @transform_1(%arg0: i32) -> (i32, i32) {
    %c0_i32 = arith.constant 0 : i32
    %c0_i32_0 = arith.constant 0 : i32
    return %c0_i32, %arg0 : i32, i32
  }
  func.func @transform_2(%arg0: i32) -> (i32, i32) {
    %c0_i32 = arith.constant 0 : i32
    %c0_i32_0 = arith.constant 0 : i32
    return %c0_i32, %arg0 : i32, i32
  }
}

</mosaic_0001>

<llo_original>
// kernel: tpu_custom_call.1
$region0: #{tpu_custom_call.1}
  #allocation0 [shape = 'u32[]', space=smem, size = 0x4, offset = 0x4, fixed_abs, tag = 'smem constant byte address 0x4 - core index']
  #allocation1 [shape = 'u32[144,128]{1,0:T(1,128)}', space=vmem, size = 0x12000, scoped, tag = 'internal scratch']
  %s0 = inlined_call_operand.hbm [shape: f32[8,2048], index: 0, kind: input, shape index: {}]
  %s1 = inlined_call_operand.hbm [shape: f32[8,2048], index: 1, kind: input, shape index: {}]
  %s2 = inlined_call_operand.hbm [shape: f32[1,2048], index: 2, kind: output, shape index: {}]
  %s3 = sld [smem:[#allocation0]]
  $region26: #{tpu_custom_call.1} parent=0
    _
  %s5 = ssub.s32 1, %s3
  %s6 = scalar_select 0, %s5, %s3
  $region1: #{tpu_custom_call.1} parent=0
    #allocation2 [shape = 'u8[65536]{0}', space=vmem, size = 0x10000, scoped, tag = 'input window, operand 0, single buffered']
    #allocation3 [shape = 's32[1]{0}', space=sflag, size = 0x4, scoped, tag = 'scoped memory for tpu_custom_call.1']
    #allocation4 [shape = 's32[1]{0}', space=sflag, size = 0x4, scoped, tag = 'scoped memory for tpu_custom_call.1']
    #allocation5 [shape = 'u8[65536]{0}', space=vmem, size = 0x10000, scoped, tag = 'input window, operand 1, single buffered']
    #allocation6 [shape = 's32[1]{0}', space=sflag, size = 0x4, scoped, tag = 'scoped memory for tpu_custom_call.1']
    #allocation7 [shape = 'u8[8192]{0}', space=vmem, size = 0x2000, scoped, tag = 'output window, operand 0, single buffered']
    %7 = vsyncpa [#allocation3], 0
    %8 = vsyncpa [#allocation6], 0
    %9 = vsyncpa [#allocation4], 0
    // Predicated region
    $region2: #{tpu_custom_call.1} parent=1 // pred_check
      _
    $region3: #{tpu_custom_call.1} parent=1 // pred_check_branch
      %11 = sbr.rel (0) target = $region5
    $region4: #{tpu_custom_call.1} parent=1 // pred_region
      %s13 = ssub.s32 2048, 2048
      %14 = vsyncadd [#allocation3], %s13
      %s16 = sshll.u32 [#allocation2], 4
      %s17 = int_to_ptr.vmem [resolvable:$true] %s16
      %19 = dma.hbm_to_vmem [thread:$0]  %s0, 2048, %s17, [#allocation3]
    $region5: #{tpu_custom_call.1} parent=1 // pred_fallthru
      _
    // Predicated region
    $region6: #{tpu_custom_call.1} parent=1 // pred_check
      _
    $region7: #{tpu_custom_call.1} parent=1 // pred_check_branch
      %21 = sbr.rel (0) target = $region9
    $region8: #{tpu_custom_call.1} parent=1 // pred_region
      %s23 = ssub.s32 2048, 2048
      %24 = vsyncadd [#allocation6], %s23
      %s26 = sshll.u32 [#allocation5], 4
      %s27 = int_to_ptr.vmem [resolvable:$true] %s26
      %29 = dma.hbm_to_vmem [thread:$0]  %s1, 2048, %s27, [#allocation6]
    $region9: #{tpu_custom_call.1} parent=1 // pred_fallthru
      _
    // Predicated region
    $region10: #{tpu_custom_call.1} parent=1 // pred_check
      _
    $region11: #{tpu_custom_call.1} parent=1 // pred_check_branch
      %31 = sbr.rel (0) target = $region13
    $region12: #{tpu_custom_call.1} parent=1 // pred_region
      %32 = dma.done [#allocation3], 2048
    $region13: #{tpu_custom_call.1} parent=1 // pred_fallthru
      _
    // Predicated region
    $region14: #{tpu_custom_call.1} parent=1 // pred_check
      _
    $region15: #{tpu_custom_call.1} parent=1 // pred_check_branch
      %34 = sbr.rel (0) target = $region17
    $region16: #{tpu_custom_call.1} parent=1 // pred_region
      %35 = dma.done [#allocation6], 2048
    $region17: #{tpu_custom_call.1} parent=1 // pred_fallthru
      _
    %v36 = vld [vmem:[#allocation2] sm:$0xff]
    %v37 = vld [vmem:[#allocation2 + $0x8] sm:$0xff]
    %v38 = vld [vmem:[#allocation2 + $0x10] sm:$0xff]
    %v39 = vld [vmem:[#allocation2 + $0x18] sm:$0xff]
    %v40 = vld [vmem:[#allocation2 + $0x20] sm:$0xff]
    %v41 = vld [vmem:[#allocation2 + $0x28] sm:$0xff]
    %v42 = vld [vmem:[#allocation2 + $0x30] sm:$0xff]
    %v43 = vld [vmem:[#allocation2 + $0x38] sm:$0xff]
    %v44 = vld [vmem:[#allocation2 + $0x40] sm:$0xff]
    %v45 = vld [vmem:[#allocation2 + $0x48] sm:$0xff]
    %v46 = vld [vmem:[#allocation2 + $0x50] sm:$0xff]
    %v47 = vld [vmem:[#allocation2 + $0x58] sm:$0xff]
    %v48 = vld [vmem:[#allocation2 + $0x60] sm:$0xff]
    %v49 = vld [vmem:[#allocation2 + $0x68] sm:$0xff]
    %v50 = vld [vmem:[#allocation2 + $0x70] sm:$0xff]
    %v51 = vld [vmem:[#allocation2 + $0x78] sm:$0xff]
    %v52 = vld [vmem:[#allocation5] sm:$0xff]
    %v53 = vld [vmem:[#allocation5 + $0x8] sm:$0xff]
    %v54 = vld [vmem:[#allocation5 + $0x10] sm:$0xff]
    %v55 = vld [vmem:[#allocation5 + $0x18] sm:$0xff]
    %v56 = vld [vmem:[#allocation5 + $0x20] sm:$0xff]
    %v57 = vld [vmem:[#allocation5 + $0x28] sm:$0xff]
    %v58 = vld [vmem:[#allocation5 + $0x30] sm:$0xff]
    %v59 = vld [vmem:[#allocation5 + $0x38] sm:$0xff]
    %v60 = vld [vmem:[#allocation5 + $0x40] sm:$0xff]
    %v61 = vld [vmem:[#allocation5 + $0x48] sm:$0xff]
    %v62 = vld [vmem:[#allocation5 + $0x50] sm:$0xff]
    %v63 = vld [vmem:[#allocation5 + $0x58] sm:$0xff]
    %v64 = vld [vmem:[#allocation5 + $0x60] sm:$0xff]
    %v65 = vld [vmem:[#allocation5 + $0x68] sm:$0xff]
    %v66 = vld [vmem:[#allocation5 + $0x70] sm:$0xff]
    %v67 = vld [vmem:[#allocation5 + $0x78] sm:$0xff]
    %v68 = vmul.f32 %v36, %v52
    %v69 = vmul.f32 %v37, %v53
    %v70 = vmul.f32 %v38, %v54
    %v71 = vmul.f32 %v39, %v55
    %v72 = vmul.f32 %v40, %v56
    %v73 = vmul.f32 %v41, %v57
    %v74 = vmul.f32 %v42, %v58
    %v75 = vmul.f32 %v43, %v59
    %v76 = vmul.f32 %v44, %v60
    %v77 = vmul.f32 %v45, %v61
    %v78 = vmul.f32 %v46, %v62
    %v79 = vmul.f32 %v47, %v63
    %v80 = vmul.f32 %v48, %v64
    %v81 = vmul.f32 %v49, %v65
    %v82 = vmul.f32 %v50, %v66
    %v83 = vmul.f32 %v51, %v67
    %v84 = vrot.slane %v68, 4
    %v85 = vadd.f32 %v68, %v84
    %v86 = vrot.slane %v85, 2
    %v87 = vadd.f32 %v85, %v86
    %v88 = vrot.slane %v87, 1
    %v89 = vadd.f32 %v87, %v88
    %v90 = vrot.slane %v69, 4
    %v91 = vadd.f32 %v69, %v90
    %v92 = vrot.slane %v91, 2
    %v93 = vadd.f32 %v91, %v92
    %v94 = vrot.slane %v93, 1
    %v95 = vadd.f32 %v93, %v94
    %v96 = vrot.slane %v70, 4
    %v97 = vadd.f32 %v70, %v96
    %v98 = vrot.slane %v97, 2
    %v99 = vadd.f32 %v97, %v98
    %v100 = vrot.slane %v99, 1
    %v101 = vadd.f32 %v99, %v100
    %v102 = vrot.slane %v71, 4
    %v103 = vadd.f32 %v71, %v102
    %v104 = vrot.slane %v103, 2
    %v105 = vadd.f32 %v103, %v104
    %v106 = vrot.slane %v105, 1
    %v107 = vadd.f32 %v105, %v106
    %v108 = vrot.slane %v72, 4
    %v109 = vadd.f32 %v72, %v108
    %v110 = vrot.slane %v109, 2
    %v111 = vadd.f32 %v109, %v110
    %v112 = vrot.slane %v111, 1
    %v113 = vadd.f32 %v111, %v112
    %v114 = vrot.slane %v73, 4
    %v115 = vadd.f32 %v73, %v114
    %v116 = vrot.slane %v115, 2
    %v117 = vadd.f32 %v115, %v116
    %v118 = vrot.slane %v117, 1
    %v119 = vadd.f32 %v117, %v118
    %v120 = vrot.slane %v74, 4
    %v121 = vadd.f32 %v74, %v120
    %v122 = vrot.slane %v121, 2
    %v123 = vadd.f32 %v121, %v122
    %v124 = vrot.slane %v123, 1
    %v125 = vadd.f32 %v123, %v124
    %v126 = vrot.slane %v75, 4
    %v127 = vadd.f32 %v75, %v126
    %v128 = vrot.slane %v127, 2
    %v129 = vadd.f32 %v127, %v128
    %v130 = vrot.slane %v129, 1
    %v131 = vadd.f32 %v129, %v130
    %v132 = vrot.slane %v76, 4
    %v133 = vadd.f32 %v76, %v132
    %v134 = vrot.slane %v133, 2
    %v135 = vadd.f32 %v133, %v134
    %v136 = vrot.slane %v135, 1
    %v137 = vadd.f32 %v135, %v136
    %v138 = vrot.slane %v77, 4
    %v139 = vadd.f32 %v77, %v138
    %v140 = vrot.slane %v139, 2
    %v141 = vadd.f32 %v139, %v140
    %v142 = vrot.slane %v141, 1
    %v143 = vadd.f32 %v141, %v142
    %v144 = vrot.slane %v78, 4
    %v145 = vadd.f32 %v78, %v144
    %v146 = vrot.slane %v145, 2
    %v147 = vadd.f32 %v145, %v146
    %v148 = vrot.slane %v147, 1
    %v149 = vadd.f32 %v147, %v148
    %v150 = vrot.slane %v79, 4
    %v151 = vadd.f32 %v79, %v150
    %v152 = vrot.slane %v151, 2
    %v153 = vadd.f32 %v151, %v152
    %v154 = vrot.slane %v153, 1
    %v155 = vadd.f32 %v153, %v154
    %v156 = vrot.slane %v80, 4
    %v157 = vadd.f32 %v80, %v156
    %v158 = vrot.slane %v157, 2
    %v159 = vadd.f32 %v157, %v158
    %v160 = vrot.slane %v159, 1
    %v161 = vadd.f32 %v159, %v160
    %v162 = vrot.slane %v81, 4
    %v163 = vadd.f32 %v81, %v162
    %v164 = vrot.slane %v163, 2
    %v165 = vadd.f32 %v163, %v164
    %v166 = vrot.slane %v165, 1
    %v167 = vadd.f32 %v165, %v166
    %v168 = vrot.slane %v82, 4
    %v169 = vadd.f32 %v82, %v168
    %v170 = vrot.slane %v169, 2
    %v171 = vadd.f32 %v169, %v170
    %v172 = vrot.slane %v171, 1
    %v173 = vadd.f32 %v171, %v172
    %v174 = vrot.slane %v83, 4
    %v175 = vadd.f32 %v83, %v174
    %v176 = vrot.slane %v175, 2
    %v177 = vadd.f32 %v175, %v176
    %v178 = vrot.slane %v177, 1
    %v179 = vadd.f32 %v177, %v178
    %v180 = vxor.u32 %v89, 2147483648
    %v181 = vxor.u32 %v95, 2147483648
    %v182 = vxor.u32 %v101, 2147483648
    %v183 = vxor.u32 %v107, 2147483648
    %v184 = vxor.u32 %v113, 2147483648
    %v185 = vxor.u32 %v119, 2147483648
    %v186 = vxor.u32 %v125, 2147483648
    %v187 = vxor.u32 %v131, 2147483648
    %v188 = vxor.u32 %v137, 2147483648
    %v189 = vxor.u32 %v143, 2147483648
    %v190 = vxor.u32 %v149, 2147483648
    %v191 = vxor.u32 %v155, 2147483648
    %v192 = vxor.u32 %v161, 2147483648
    %v193 = vxor.u32 %v167, 2147483648
    %v194 = vxor.u32 %v173, 2147483648
    %v195 = vxor.u32 %v179, 2147483648
    %v196 = vmul.f32 %v180, 1.442695
    %v197 = vpow.pop %v196
    %v198 = vmul.f32 %v181, 1.442695
    %v199 = vpow.pop %v198
    %v200 = vmul.f32 %v182, 1.442695
    %v201 = vpow.pop %v200
    %v202 = vmul.f32 %v183, 1.442695
    %v203 = vpow.pop %v202
    %v204 = vmul.f32 %v184, 1.442695
    %v205 = vpow.pop %v204
    %v206 = vmul.f32 %v185, 1.442695
    %v207 = vpow.pop %v206
    %v208 = vmul.f32 %v186, 1.442695
    %v209 = vpow.pop %v208
    %v210 = vmul.f32 %v187, 1.442695
    %v211 = vpow.pop %v210
    %v212 = vmul.f32 %v188, 1.442695
    %v213 = vpow.pop %v212
    %v214 = vmul.f32 %v189, 1.442695
    %v215 = vpow.pop %v214
    %v216 = vmul.f32 %v190, 1.442695
    %v217 = vpow.pop %v216
    %v218 = vmul.f32 %v191, 1.442695
    %v219 = vpow.pop %v218
    %v220 = vmul.f32 %v192, 1.442695
    %v221 = vpow.pop %v220
    %v222 = vmul.f32 %v193, 1.442695
    %v223 = vpow.pop %v222
    %v224 = vmul.f32 %v194, 1.442695
    %v225 = vpow.pop %v224
    %v226 = vmul.f32 %v195, 1.442695
    %v227 = vpow.pop %v226
    %v228 = vadd.f32 %v197, 1.0
    %v229 = vadd.f32 %v199, 1.0
    %v230 = vadd.f32 %v201, 1.0
    %v231 = vadd.f32 %v203, 1.0
    %v232 = vadd.f32 %v205, 1.0
    %v233 = vadd.f32 %v207, 1.0
    %v234 = vadd.f32 %v209, 1.0
    %v235 = vadd.f32 %v211, 1.0
    %v236 = vadd.f32 %v213, 1.0
    %v237 = vadd.f32 %v215, 1.0
    %v238 = vadd.f32 %v217, 1.0
    %v239 = vadd.f32 %v219, 1.0
    %v240 = vadd.f32 %v221, 1.0
    %v241 = vadd.f32 %v223, 1.0
    %v242 = vadd.f32 %v225, 1.0
    %v243 = vadd.f32 %v227, 1.0
    %v244 = vrcp.pop %v228
    %v245 = vmul.f32 1.0, %v244
    %v246 = vrcp.pop %v229
    %v247 = vmul.f32 1.0, %v246
    %v248 = vrcp.pop %v230
    %v249 = vmul.f32 1.0, %v248
    %v250 = vrcp.pop %v231
    %v251 = vmul.f32 1.0, %v250
    %v252 = vrcp.pop %v232
    %v253 = vmul.f32 1.0, %v252
    %v254 = vrcp.pop %v233
    %v255 = vmul.f32 1.0, %v254
    %v256 = vrcp.pop %v234
    %v257 = vmul.f32 1.0, %v256
    %v258 = vrcp.pop %v235
    %v259 = vmul.f32 1.0, %v258
    %v260 = vrcp.pop %v236
    %v261 = vmul.f32 1.0, %v260
    %v262 = vrcp.pop %v237
    %v263 = vmul.f32 1.0, %v262
    %v264 = vrcp.pop %v238
    %v265 = vmul.f32 1.0, %v264
    %v266 = vrcp.pop %v239
    %v267 = vmul.f32 1.0, %v266
    %v268 = vrcp.pop %v240
    %v269 = vmul.f32 1.0, %v268
    %v270 = vrcp.pop %v241
    %v271 = vmul.f32 1.0, %v270
    %v272 = vrcp.pop %v242
    %v273 = vmul.f32 1.0, %v272
    %v274 = vrcp.pop %v243
    %v275 = vmul.f32 1.0, %v274
    %v292 = vcombine.low %v245, %v247
    %v293 = vcombine.low %v249, %v251
    %v294 = vcombine.low %v253, %v255
    %v295 = vcombine.low %v257, %v259
    %v297 = vunpack.c.l.s4 1966171168
    %v298 = vunpack.c.0.s8 %v297
    %v299 = vlaneseq
    %v300 = vshrl.u32 %v299, 7
    %v301 = vsub.s32 %v298, %v300
    %v302 = vrot.slane %v292, %v301
    %v304 = vunpack.c.l.s4 1966171168
    %v305 = vunpack.c.0.s8 %v304
    %v306 = vlaneseq
    %v307 = vshrl.u32 %v306, 7
    %v308 = vsub.s32 %v305, %v307
    %v309 = vrot.slane %v293, %v308
    %v311 = vunpack.c.l.s4 1966171168
    %v312 = vunpack.c.0.s8 %v311
    %v313 = vlaneseq
    %v314 = vshrl.u32 %v313, 7
    %v315 = vsub.s32 %v312, %v314
    %v316 = vrot.slane %v294, %v315
    %v318 = vunpack.c.l.s4 1966171168
    %v319 = vunpack.c.0.s8 %v318
    %v320 = vlaneseq
    %v321 = vshrl.u32 %v320, 7
    %v322 = vsub.s32 %v319, %v321
    %v323 = vrot.slane %v295, %v322
    %v324 = vcombine.low %v302, %v309
    %v325 = vcombine.low %v316, %v323
    %v327 = vunpack.c.l.s4 1966171168
    %v328 = vunpack.c.0.s8 %v327
    %v329 = vlaneseq
    %v330 = vshrl.u32 %v329, 7
    %v331 = vsub.s32 %v328, %v330
    %v332 = vrot.slane %v324, %v331
    %v334 = vunpack.c.l.s4 1966171168
    %v335 = vunpack.c.0.s8 %v334
    %v336 = vlaneseq
    %v337 = vshrl.u32 %v336, 7
    %v338 = vsub.s32 %v335, %v337
    %v339 = vrot.slane %v325, %v338
    %v340 = vcombine.low %v332, %v339
    %v341 = vcombine.low %v261, %v263
    %v342 = vcombine.low %v265, %v267
    %v343 = vcombine.low %v269, %v271
    %v344 = vcombine.low %v273, %v275
    %v346 = vunpack.c.l.s4 1966171168
    %v347 = vunpack.c.0.s8 %v346
    %v348 = vlaneseq
    %v349 = vshrl.u32 %v348, 7
    %v350 = vsub.s32 %v347, %v349
    %v351 = vrot.slane %v341, %v350
    %v353 = vunpack.c.l.s4 1966171168
    %v354 = vunpack.c.0.s8 %v353
    %v355 = vlaneseq
    %v356 = vshrl.u32 %v355, 7
    %v357 = vsub.s32 %v354, %v356
    %v358 = vrot.slane %v342, %v357
    %v360 = vunpack.c.l.s4 1966171168
    %v361 = vunpack.c.0.s8 %v360
    %v362 = vlaneseq
    %v363 = vshrl.u32 %v362, 7
    %v364 = vsub.s32 %v361, %v363
    %v365 = vrot.slane %v343, %v364
    %v367 = vunpack.c.l.s4 1966171168
    %v368 = vunpack.c.0.s8 %v367
    %v369 = vlaneseq
    %v370 = vshrl.u32 %v369, 7
    %v371 = vsub.s32 %v368, %v370
    %v372 = vrot.slane %v344, %v371
    %v373 = vcombine.low %v351, %v358
    %v374 = vcombine.low %v365, %v372
    %v376 = vunpack.c.l.s4 1966171168
    %v377 = vunpack.c.0.s8 %v376
    %v378 = vlaneseq
    %v379 = vshrl.u32 %v378, 7
    %v380 = vsub.s32 %v377, %v379
    %v381 = vrot.slane %v373, %v380
    %v383 = vunpack.c.l.s4 1966171168
    %v384 = vunpack.c.0.s8 %v383
    %v385 = vlaneseq
    %v386 = vshrl.u32 %v385, 7
    %v387 = vsub.s32 %v384, %v386
    %v388 = vrot.slane %v374, %v387
    %v389 = vcombine.low %v381, %v388
    %392 = vst [vmem:[#allocation7] sm:$0xff] %v340
    %393 = vst [vmem:[#allocation7 + $0x8] sm:$0xff] %v389
    // Predicated region
    $region18: #{tpu_custom_call.1} parent=1 // pred_check
      _
    $region19: #{tpu_custom_call.1} parent=1 // pred_check_branch
      %395 = sbr.rel (0) target = $region21
    $region20: #{tpu_custom_call.1} parent=1 // pred_region
      %s397 = ssub.s32 256, 256
      %398 = vsyncadd [#allocation4], %s397
      %s400 = sshll.u32 [#allocation7], 4
      %s401 = int_to_ptr.vmem [resolvable:$true] %s400
      %403 = dma.vmem_to_hbm [thread:$0]  %s401, 256, %s2, [#allocation4]
    $region21: #{tpu_custom_call.1} parent=1 // pred_fallthru
      _
    // Predicated region
    $region22: #{tpu_custom_call.1} parent=1 // pred_check
      _
    $region23: #{tpu_custom_call.1} parent=1 // pred_check_branch
      %405 = sbr.rel (0) target = $region25
    $region24: #{tpu_custom_call.1} parent=1 // pred_region
      %406 = dma.done [#allocation4], 256
    $region25: #{tpu_custom_call.1} parent=1 // pred_fallthru
      _
    %407 = vsyncpa [#allocation3], 1
    %408 = vsyncpa [#allocation6], 1
    %409 = vsyncpa [#allocation4], 1

</llo_original>
